<compile_context>
chip_gen: v7x
topology: tpu7x:2x2x1
jax: 0.10.0
libtpu: 0.0.40
codegen_flags: <defaults>
</compile_context>

<pallas_src>
import functools
import re

import jax
import jax.numpy as jnp
from jax import lax
from jax.experimental import pallas as pl
from jax.experimental.pallas import tpu as pltpu


_SQRT_HALF = 0.7071067811865476


def _gelu_exact(x):
    # Matches torch.nn.GELU() default (erf-based, not the tanh approximation).
    return 0.5 * x * (1.0 + lax.erf(x * _SQRT_HALF))


def mlp_kernel(x_ref, w1_ref, b1_ref, w2_ref, b2_ref, o_ref, acc_ref, *, gelu_dtype):
    f = pl.program_id(1)

    @pl.when(f == 0)
    def _():
        acc_ref[...] = jnp.zeros_like(acc_ref)

    # hidden tile = GELU(x @ W1[:, f_tile] + b1[f_tile]); MXU in native dtype,
    # f32 accumulate, bias-add in f32.
    h = jnp.dot(x_ref[...], w1_ref[...], preferred_element_type=jnp.float32)
    h = h + b1_ref[...].astype(jnp.float32)
    # GELU compute dtype: bf16 on v6e/v7x bf16 models (cheap VALU, result is
    # downcast right after anyway), f32 otherwise (v5e has no bf16 VPU/EUP).
    h = _gelu_exact(h.astype(gelu_dtype))

    # Dropout -> identity (eval mode).
    # TODO(synk): training-mode dropout via pltpu.prng_seed / prng_random_bits.

    # Partial second matmul over this F tile; hidden goes back to the weight
    # dtype so the MXU stays on its native fast path.
    acc_ref[...] += jnp.dot(
        h.astype(w2_ref.dtype), w2_ref[...], preferred_element_type=jnp.float32
    )

    @pl.when(f == pl.num_programs(1) - 1)
    def _():
        y = acc_ref[...] + b2_ref[...].astype(jnp.float32)
        o_ref[...] = _gelu_exact(y.astype(gelu_dtype)).astype(o_ref.dtype)


def _round_up(a, b):
    return ((a + b - 1) // b) * b


def _round_down(a, b):
    return (a // b) * b


def _tpu_generation():
    try:
        kind = jax.devices()[0].device_kind
        m = re.search(r"v(\d+)", kind)
        if m:
            return int(m.group(1))
    except Exception:
        pass
    return 0


def _vmem_capacity_bytes():
    try:
        cap = int(pltpu.get_tpu_info().vmem_capacity_bytes)
        if cap > 0:
            return cap
    except Exception:
        pass
    # Fallback by device kind: v7x has 64 MiB per TensorCore, v5e/v6e 128 MiB.
    return (64 if _tpu_generation() >= 7 else 128) * 1024 * 1024


def _vmem_bytes(tm, tf, D, in_size, w_size):
    return (
        2 * tm * D * in_size                        # x tile (double-buffered)
        + 2 * tm * D * in_size                      # out tile (double-buffered)
        + 2 * (D * tf + tf * D + tf + D) * w_size   # W1/b1/W2/b2 slices (double-buffered)
        + tm * D * 4                                # f32 accumulator scratch
        + 2 * tm * tf * 4                           # f32 hidden intermediate + slack
    )


def _pick_tiles(M, D, F, in_dtype, w_dtype):
    """F must already be a multiple of 128. Returns (tm, tf, vmem_limit_bytes)."""
    in_size = jnp.dtype(in_dtype).itemsize
    w_size = jnp.dtype(w_dtype).itemsize
    budget = int(0.85 * _vmem_capacity_bytes())     # leave compiler headroom

    # Hidden-dim tile: multiple-of-128 divisor of F.
    tf = F
    for cand in (512, 256, 128):
        if F % cand == 0:
            tf = cand
            break

    # Token tile: as large as the VMEM budget allows (intensity w.r.t. the
    # re-streamed W1/W2 slices is ~tm FLOP/byte, so big tm moves v6e/v7x from
    # weight-bandwidth-bound to MXU-bound), but keep >= 2 tiles on the
    # "parallel" axis so both v7x TensorCores get work.
    if M <= 256:
        tm = _round_up(M, 8)
    else:
        align = 256 if M >= 1024 else 128
        tm = 2048
        if M // 2 >= align:
            tm = min(tm, _round_down(M // 2, align))
        tm = max(tm, align)
        while tm > align and _vmem_bytes(tm, tf, D, in_size, w_size) > budget:
            tm -= align

    # If very large D still overflows the budget, trade hidden-tile width.
    while (tf > 128 and F % (tf // 2) == 0
           and _vmem_bytes(tm, tf, D, in_size, w_size) > budget):
        tf //= 2

    # Secondary lever: widen tf to 1024 (fewer reduction steps, less acc RMW)
    # when it divides F and fits the budget.
    if F % 1024 == 0 and _vmem_bytes(tm, 1024, D, in_size, w_size) <= budget:
        tf = 1024

    vmem_est = _vmem_bytes(tm, tf, D, in_size, w_size)
    vmem_limit = int(min(budget, max(2 * vmem_est, 32 * 1024 * 1024)))
    return tm, tf, vmem_limit


def mlp_forward(x, w1, b1, w2, b2, *, tm=None, tf=None):
    """Fused Linear->GELU->Dropout(eval)->Linear->GELU.  x: (B, S, d_model)."""
    B, S, D = x.shape
    F = w1.shape[1]
    M = B * S

    # Pad the hidden dim to a multiple of 128 so it tiles cleanly.  Padded
    # hidden columns give GELU(0 + 0) = 0 and the matching (zero) W2 rows
    # contribute nothing, so this is exact.
    F_pad = _round_up(F, 128)
    if F_pad != F:
        w1 = jnp.pad(w1, ((0, 0), (0, F_pad - F)))
        b1 = jnp.pad(b1, (0, F_pad - F))
        w2 = jnp.pad(w2, ((0, F_pad - F), (0, 0)))

    auto_tm, auto_tf, vmem_limit = _pick_tiles(M, D, F_pad, x.dtype, w1.dtype)
    tm = auto_tm if tm is None else tm
    tf = auto_tf if tf is None else tf
    assert F_pad % tf == 0, "hidden tile must divide the (padded) hidden dim"

    M_pad = _round_up(M, tm)
    x2 = x.reshape(M, D)
    if M_pad != M:
        x2 = jnp.pad(x2, ((0, M_pad - M), (0, 0)))

    b1_2 = b1.reshape(1, F_pad)
    b2_2 = b2.reshape(1, D)

    grid = (M_pad // tm, F_pad // tf)

    gelu_dtype = (
        jnp.bfloat16
        if (x.dtype == jnp.bfloat16 and _tpu_generation() >= 6)
        else jnp.float32
    )

    in_size = jnp.dtype(x.dtype).itemsize
    w_size = jnp.dtype(w1.dtype).itemsize
    flops = 4 * M_pad * D * F_pad                 # two matmuls: 2*M*D*F each
    transcendentals = M_pad * (F_pad + D)         # one erf per hidden/output elem
    bytes_accessed = int(
        2 * M_pad * D * in_size                                  # x in + y out
        + (M_pad // tm) * (2 * D * F_pad + F_pad + D) * w_size   # weight re-streaming
    )

    out = pl.pallas_call(
        functools.partial(mlp_kernel, gelu_dtype=gelu_dtype),
        out_shape=jax.ShapeDtypeStruct((M_pad, D), x.dtype),
        grid_spec=pltpu.PrefetchScalarGridSpec(
            num_scalar_prefetch=0,
            grid=grid,
            in_specs=[
                pl.BlockSpec((tm, D), lambda i, f: (i, 0)),   # x tile (resident over f)
                pl.BlockSpec((D, tf), lambda i, f: (0, f)),   # W1 slice
                pl.BlockSpec((1, tf), lambda i, f: (0, f)),   # b1 slice
                pl.BlockSpec((tf, D), lambda i, f: (f, 0)),   # W2 slice
                pl.BlockSpec((1, D), lambda i, f: (0, 0)),    # b2 (constant)
            ],
            out_specs=pl.BlockSpec((tm, D), lambda i, f: (i, 0)),
            scratch_shapes=[pltpu.VMEM((tm, D), jnp.float32)],
        ),
        compiler_params=pltpu.CompilerParams(
            dimension_semantics=("parallel", "arbitrary"),
            vmem_limit_bytes=vmem_limit,
        ),
        cost_estimate=pl.CostEstimate(
            flops=flops,
            transcendentals=transcendentals,
            bytes_accessed=bytes_accessed,
        ),
    )(x2, w1, b1_2, w2, b2_2)

    if M_pad != M:
        out = out[:M]
    return out.reshape(B, S, D)


def reference_forward(x, w1, b1, w2, b2):
    h = jax.nn.gelu(jnp.einsum("bsd,df->bsf", x, w1) + b1, approximate=False)
    return jax.nn.gelu(jnp.einsum("bsf,fd->bsd", h, w2) + b2, approximate=False)


if __name__ == "__main__":
    # Small shapes consistent with a transformer-encoder MLP block.
    B, S, d_model, mlp_size = 2, 8, 32, 64
    dropout_ratio = 0.1  # eval mode -> identity

    key = jax.random.PRNGKey(0)
    kx, k1, k2, k3, k4 = jax.random.split(key, 5)

    x = jax.random.normal(kx, (B, S, d_model), dtype=jnp.float32)
    # Parameters stored already transposed vs torch's (out_features, in_features)
    # so the kernel does plain x @ W.
    w1 = jax.random.normal(k1, (d_model, mlp_size), dtype=jnp.float32) * 0.05
    b1 = jax.random.normal(k2, (mlp_size,), dtype=jnp.float32) * 0.05
    w2 = jax.random.normal(k3, (mlp_size, d_model), dtype=jnp.float32) * 0.05
    b2 = jax.random.normal(k4, (d_model,), dtype=jnp.float32) * 0.05

    out = mlp_forward(x, w1, b1, w2, b2)
    out = jax.block_until_ready(out)

    ref = reference_forward(x, w1, b1, w2, b2)
    assert out.shape == (B, S, d_model)
    assert jnp.allclose(out, ref, atol=1e-5, rtol=1e-5), "mismatch vs reference"

    print("KERNEL_OK")
</pallas_src>

<mosaic_0001>
module attributes {stable_mosaic.version = 11 : i64} {
  func.func @mlp_kernel(%arg0: i32, %arg1: i32, %arg2: memref<16x32xf32, #tpu.memory_space<vmem>>, %arg3: memref<32x128xf32, #tpu.memory_space<vmem>>, %arg4: memref<1x128xf32, #tpu.memory_space<vmem>>, %arg5: memref<128x32xf32, #tpu.memory_space<vmem>>, %arg6: memref<1x32xf32, #tpu.memory_space<vmem>>, %arg7: memref<16x32xf32, #tpu.memory_space<vmem>>, %arg8: memref<16x32xf32, #tpu.memory_space<vmem>>) attributes {dimension_semantics = [#tpu.dimension_semantics<parallel>, #tpu.dimension_semantics<arbitrary>], iteration_bounds = array<i64: 1, 1>, scalar_prefetch = 0 : i64, scratch_operands = 1 : i64, tpu.core_type = #tpu.core_type<tc>, window_params = [{transform_indices = @transform_0, window_bounds = array<i64: 16, 32>}, {transform_indices = @transform_1, window_bounds = array<i64: 32, 128>}, {transform_indices = @transform_2, window_bounds = array<i64: 1, 128>}, {transform_indices = @transform_3, window_bounds = array<i64: 128, 32>}, {pipeline_mode = #tpu.pipeline_mode<synchronous>, transform_indices = @transform_4, window_bounds = array<i64: 1, 32>}, {transform_indices = @transform_5, window_bounds = array<i64: 16, 32>}]} {
    %c0_i32 = arith.constant 0 : i32
    %0 = arith.cmpi eq, %arg1, %c0_i32 : i32
    %1 = arith.extui %0 : i1 to i32
    %c0_i32_0 = arith.constant 0 : i32
    %2 = arith.cmpi ne, %1, %c0_i32_0 : i32
    scf.if %2 {
      %cst_18 = arith.constant 0.000000e+00 : f32
      %25 = vector.broadcast %cst_18 : f32 to vector<16x32xf32>
      %c0_19 = arith.constant 0 : index
      %c0_20 = arith.constant 0 : index
      %26 = vector.load %arg8[%c0_19, %c0_20] : memref<16x32xf32, #tpu.memory_space<vmem>>, vector<16x32xf32>
      tpu.vector_store %arg8[%c0_19, %c0_20], %25 {strides = array<i32>} : memref<16x32xf32, #tpu.memory_space<vmem>>, vector<16x32xf32>,
    } else {
    }
    %c0 = arith.constant 0 : index
    %c0_1 = arith.constant 0 : index
    %3 = vector.load %arg2[%c0, %c0_1] : memref<16x32xf32, #tpu.memory_space<vmem>>, vector<16x32xf32>
    %c0_2 = arith.constant 0 : index
    %c0_3 = arith.constant 0 : index
    %4 = vector.load %arg3[%c0_2, %c0_3] : memref<32x128xf32, #tpu.memory_space<vmem>>, vector<32x128xf32>
    %cst = arith.constant dense<0.000000e+00> : vector<16x128xf32>
    %5 = tpu.matmul %3, %4, %cst {dimension_numbers = #tpu.dot_dimension_numbers<[1], [0], [0], [1], [0, 0, 1, 1], [], []>} : vector<16x32xf32>, vector<32x128xf32>, vector<16x128xf32> -> vector<16x128xf32>
    %c0_4 = arith.constant 0 : index
    %c0_5 = arith.constant 0 : index
    %6 = vector.load %arg4[%c0_4, %c0_5] : memref<1x128xf32, #tpu.memory_space<vmem>>, vector<1x128xf32>
    %7 = vector.broadcast %6 : vector<1x128xf32> to vector<16x128xf32>
    %8 = arith.addf %5, %7 : vector<16x128xf32>
    %cst_6 = arith.constant 5.000000e-01 : f32
    %9 = vector.broadcast %cst_6 : f32 to vector<16x128xf32>
    %10 = arith.mulf %9, %8 : vector<16x128xf32>
    %cst_7 = arith.constant 0.707106769 : f32
    %11 = vector.broadcast %cst_7 : f32 to vector<16x128xf32>
    %12 = arith.mulf %8, %11 : vector<16x128xf32>
    %13 = math.erf %12 : vector<16x128xf32>
    %cst_8 = arith.constant 1.000000e+00 : f32
    %14 = vector.broadcast %cst_8 : f32 to vector<16x128xf32>
    %15 = arith.addf %14, %13 : vector<16x128xf32>
    %16 = arith.mulf %10, %15 : vector<16x128xf32>
    %c0_9 = arith.constant 0 : index
    %c0_10 = arith.constant 0 : index
    %17 = vector.load %arg8[%c0_9, %c0_10] : memref<16x32xf32, #tpu.memory_space<vmem>>, vector<16x32xf32>
    %c0_11 = arith.constant 0 : index
    %c0_12 = arith.constant 0 : index
    %18 = vector.load %arg5[%c0_11, %c0_12] : memref<128x32xf32, #tpu.memory_space<vmem>>, vector<128x32xf32>
    %cst_13 = arith.constant dense<0.000000e+00> : vector<16x32xf32>
    %19 = tpu.matmul %16, %18, %cst_13 {dimension_numbers = #tpu.dot_dimension_numbers<[1], [0], [0], [1], [0, 0, 1, 1], [], []>} : vector<16x128xf32>, vector<128x32xf32>, vector<16x32xf32> -> vector<16x32xf32>
    %20 = arith.addf %17, %19 : vector<16x32xf32>
    %c0_14 = arith.constant 0 : index
    %c0_15 = arith.constant 0 : index
    %21 = vector.load %arg8[%c0_14, %c0_15] : memref<16x32xf32, #tpu.memory_space<vmem>>, vector<16x32xf32>
    tpu.vector_store %arg8[%c0_14, %c0_15], %20 {strides = array<i32>} : memref<16x32xf32, #tpu.memory_space<vmem>>, vector<16x32xf32>,
    %c0_i32_16 = arith.constant 0 : i32
    %22 = arith.cmpi eq, %arg1, %c0_i32_16 : i32
    %23 = arith.extui %22 : i1 to i32
    %c0_i32_17 = arith.constant 0 : i32
    %24 = arith.cmpi ne, %23, %c0_i32_17 : i32
    scf.if %24 {
      %c0_18 = arith.constant 0 : index
      %c0_19 = arith.constant 0 : index
      %25 = vector.load %arg8[%c0_18, %c0_19] : memref<16x32xf32, #tpu.memory_space<vmem>>, vector<16x32xf32>
      %c0_20 = arith.constant 0 : index
      %c0_21 = arith.constant 0 : index
      %26 = vector.load %arg6[%c0_20, %c0_21] : memref<1x32xf32, #tpu.memory_space<vmem>>, vector<1x32xf32>
      %27 = vector.broadcast %26 : vector<1x32xf32> to vector<16x32xf32>
      %28 = arith.addf %25, %27 : vector<16x32xf32>
      %cst_22 = arith.constant 5.000000e-01 : f32
      %29 = vector.broadcast %cst_22 : f32 to vector<16x32xf32>
      %30 = arith.mulf %29, %28 : vector<16x32xf32>
      %cst_23 = arith.constant 0.707106769 : f32
      %31 = vector.broadcast %cst_23 : f32 to vector<16x32xf32>
      %32 = arith.mulf %28, %31 : vector<16x32xf32>
      %33 = math.erf %32 : vector<16x32xf32>
      %cst_24 = arith.constant 1.000000e+00 : f32
      %34 = vector.broadcast %cst_24 : f32 to vector<16x32xf32>
      %35 = arith.addf %34, %33 : vector<16x32xf32>
      %36 = arith.mulf %30, %35 : vector<16x32xf32>
      %c0_25 = arith.constant 0 : index
      %c0_26 = arith.constant 0 : index
      %37 = vector.load %arg7[%c0_25, %c0_26] : memref<16x32xf32, #tpu.memory_space<vmem>>, vector<16x32xf32>
      tpu.vector_store %arg7[%c0_25, %c0_26], %36 {strides = array<i32>} : memref<16x32xf32, #tpu.memory_space<vmem>>, vector<16x32xf32>,
    } else {
    }
    return
  }
  func.func @transform_0(%arg0: i32, %arg1: i32) -> (i32, i32) {
    %c0_i32 = arith.constant 0 : i32
    %c0_i32_0 = arith.constant 0 : i32
    return %arg0, %c0_i32 : i32, i32
  }
  func.func @transform_1(%arg0: i32, %arg1: i32) -> (i32, i32) {
    %c0_i32 = arith.constant 0 : i32
    %c0_i32_0 = arith.constant 0 : i32
    return %c0_i32, %arg1 : i32, i32
  }
  func.func @transform_2(%arg0: i32, %arg1: i32) -> (i32, i32) {
    %c0_i32 = arith.constant 0 : i32
    %c0_i32_0 = arith.constant 0 : i32
    return %c0_i32, %arg1 : i32, i32
  }
  func.func @transform_3(%arg0: i32, %arg1: i32) -> (i32, i32) {
    %c0_i32 = arith.constant 0 : i32
    %c0_i32_0 = arith.constant 0 : i32
    return %arg1, %c0_i32 : i32, i32
  }
  func.func @transform_4(%arg0: i32, %arg1: i32) -> (i32, i32) {
    %c0_i32 = arith.constant 0 : i32
    %c0_i32_0 = arith.constant 0 : i32
    %c0_i32_1 = arith.constant 0 : i32
    return %c0_i32, %c0_i32_0 : i32, i32
  }
  func.func @transform_5(%arg0: i32, %arg1: i32) -> (i32, i32) {
    %c0_i32 = arith.constant 0 : i32
    %c0_i32_0 = arith.constant 0 : i32
    return %arg0, %c0_i32 : i32, i32
  }
}

</mosaic_0001>

<llo_original>
// kernel: tpu_custom_call.1
$region0: #{tpu_custom_call.1}
  #allocation0 [shape = 'u32[]', space=smem, size = 0x4, offset = 0x4, fixed_abs, tag = 'smem constant byte address 0x4 - core index']
  #allocation1 [shape = 'u32[144,128]{1,0:T(1,128)}', space=vmem, size = 0x12000, scoped, tag = 'internal scratch']
  #allocation2 [shape = 'f32[16,32]{1,0:T(8,128)}', space=vmem, size = 0x2000, scoped, tag = 'scratch operand']
  %s0 = inlined_call_operand.vmem [shape: f32[16,32], index: 0, kind: input, shape index: {}]
  %s1 = inlined_call_operand.vmem [shape: f32[32,128], index: 1, kind: input, shape index: {}]
  %s2 = inlined_call_operand.vmem [shape: f32[1,128], index: 2, kind: input, shape index: {}]
  %s3 = inlined_call_operand.vmem [shape: f32[128,32], index: 3, kind: input, shape index: {}]
  %s4 = inlined_call_operand.vmem [shape: f32[1,32], index: 4, kind: input, shape index: {}]
  %s5 = inlined_call_operand.hbm [shape: f32[16,32], index: 5, kind: output, shape index: {}]
  %s6 = sld [smem:[#allocation0]]
  $region38: #{tpu_custom_call.1} parent=0
    _
  %s8 = ssub.s32 1, %s6
  %s9 = scalar_select 0, %s8, %s6
  $region1: #{tpu_custom_call.1} parent=0
    #allocation3 [shape = 'u8[8192]{0}', space=vmem, size = 0x2000, scoped, tag = 'output window, operand 0, single buffered']
    #allocation4 [shape = 's32[1]{0}', space=sflag, size = 0x4, scoped, tag = 'scoped memory for tpu_custom_call.1']
    %10 = vsyncpa [#allocation4], 0
    // Predicated region
    $region2: #{tpu_custom_call.1} parent=1 // pred_check
      _
    $region3: #{tpu_custom_call.1} parent=1 // pred_check_branch
      %12 = sbr.rel (0) target = $region5
    $region4: #{tpu_custom_call.1} parent=1 // pred_region
      _
    $region5: #{tpu_custom_call.1} parent=1 // pred_fallthru
      _
    // Predicated region
    $region6: #{tpu_custom_call.1} parent=1 // pred_check
      _
    $region7: #{tpu_custom_call.1} parent=1 // pred_check_branch
      %14 = sbr.rel (0) target = $region9
    $region8: #{tpu_custom_call.1} parent=1 // pred_region
      _
    $region9: #{tpu_custom_call.1} parent=1 // pred_fallthru
      _
    // Predicated region
    $region10: #{tpu_custom_call.1} parent=1 // pred_check
      _
    $region11: #{tpu_custom_call.1} parent=1 // pred_check_branch
      %16 = sbr.rel (0) target = $region13
    $region12: #{tpu_custom_call.1} parent=1 // pred_region
      _
    $region13: #{tpu_custom_call.1} parent=1 // pred_fallthru
      _
    // Predicated region
    $region14: #{tpu_custom_call.1} parent=1 // pred_check
      _
    $region15: #{tpu_custom_call.1} parent=1 // pred_check_branch
      %18 = sbr.rel (0) target = $region17
    $region16: #{tpu_custom_call.1} parent=1 // pred_region
      _
    $region17: #{tpu_custom_call.1} parent=1 // pred_fallthru
      _
    // Predicated region
    $region18: #{tpu_custom_call.1} parent=1 // pred_check
      _
    $region19: #{tpu_custom_call.1} parent=1 // pred_check_branch
      %20 = sbr.rel (0) target = $region21
    $region20: #{tpu_custom_call.1} parent=1 // pred_region
      _
    $region21: #{tpu_custom_call.1} parent=1 // pred_fallthru
      _
    %p21 = scmp.eq.s32.totalorder 0, 0
    // Predicated region
    $region22: #{tpu_custom_call.1} parent=1 // pred_check
      %p22 = pneg %p21
    $region23: #{tpu_custom_call.1} parent=1 // pred_check_branch
      %24 = sbr.rel (%p22) target = $region25
    $region24: #{tpu_custom_call.1} parent=1 // pred_region
      %vm25 = vcmask 261120
      %26 = vst.msk [vmem:[#allocation2] sm:$0xff] %vm25, 0.0
      %27 = vst.msk [vmem:[#allocation2 + $0x8] sm:$0xff] %vm25, 0.0
    $region25: #{tpu_custom_call.1} parent=1 // pred_fallthru
      _
    %v28 = vld [vmem:[%s0] sm:$0xff]
    %v29 = vld [vmem:[%s0 + $0x8] sm:$0xff]
    %v30 = vld [vmem:[%s1] sm:$0xff]
    %v31 = vld [vmem:[%s1 + $0x8] sm:$0xff]
    %v32 = vld [vmem:[%s1 + $0x10] sm:$0xff]
    %v33 = vld [vmem:[%s1 + $0x18] sm:$0xff]
    %v34 = vld [vmem:[%s2] sm:$0x1]
    %v36 = vlaneseq
    %v37 = vshrl.u32 %v36, 7
    %v38 = vsub.s32 0, %v37
    %v39 = vrot.slane %v34, %v38
    %vm41 = vcmask 261120
    %v43 = vsel %vm41, %v28, 0
    %v46 = vsel %vm41, %v29, 0
    %48 = vmatprep.subr.mxu0 0.0
    %49 = vmatpush1.msra.mxu0 %v30
    %50 = vmatprep.subr.mxu0 0.0
    %51 = vmatpush1.msra.mxu0 %v31
    %52 = vmatprep.subr.mxu0 0.0
    %53 = vmatpush1.msra.mxu0 %v32
    %54 = vmatprep.subr.mxu0 0.0
    %55 = vmatpush1.msra.mxu0 %v33
    %56 = vmatprep.subr.mxu0 0.0
    %57 = vmatpush1.msra.mxu0 0.0
    %58 = vmatprep.subr.mxu0 0.0
    %59 = vmatpush1.msra.mxu0 0.0
    %60 = vmatprep.subr.mxu0 0.0
    %61 = vmatpush1.msra.mxu0 0.0
    %62 = vmatprep.subr.mxu0 0.0
    %63 = vmatpush1.msra.mxu0 0.0
    %64 = vmatprep.subr.mxu0 0.0
    %65 = vmatpush1.msra.mxu0 0.0
    %66 = vmatprep.subr.mxu0 0.0
    %67 = vmatpush1.msra.mxu0 0.0
    %68 = vmatprep.subr.mxu0 0.0
    %69 = vmatpush1.msra.mxu0 0.0
    %70 = vmatprep.subr.mxu0 0.0
    %71 = vmatpush1.msra.mxu0 0.0
    %72 = vmatprep.subr.mxu0 0.0
    %73 = vmatpush1.msra.mxu0 0.0
    %74 = vmatprep.subr.mxu0 0.0
    %75 = vmatpush1.msra.mxu0 0.0
    %76 = vmatprep.subr.mxu0 0.0
    %77 = vmatpush1.msra.mxu0 0.0
    %78 = vmatprep.subr.mxu0 0.0
    %79 = vmatpush1.msra.mxu0 0.0
    %80 = vmatprep.subr.mxu0 0.0
    %81 = vmatpush1.msra.mxu0 0.0
    %82 = vmatprep.subr.mxu0 0.0
    %83 = vmatpush1.msra.mxu0 0.0
    %84 = vmatprep.subr.mxu0 0.0
    %85 = vmatpush1.msra.mxu0 0.0
    %86 = vmatprep.subr.mxu0 0.0
    %87 = vmatpush1.msra.mxu0 0.0
    %88 = vmatprep.subr.mxu0 0.0
    %89 = vmatpush1.msra.mxu0 0.0
    %90 = vmatprep.subr.mxu0 0.0
    %91 = vmatpush1.msra.mxu0 0.0
    %92 = vmatprep.subr.mxu0 0.0
    %93 = vmatpush1.msra.mxu0 0.0
    %94 = vmatprep.subr.mxu0 0.0
    %95 = vmatpush1.msra.mxu0 0.0
    %96 = vmatprep.subr.mxu0 0.0
    %97 = vmatpush1.msra.mxu0 0.0
    %98 = vmatprep.subr.mxu0 0.0
    %99 = vmatpush1.msra.mxu0 0.0
    %100 = vmatprep.subr.mxu0 0.0
    %101 = vmatpush1.msra.mxu0 0.0
    %102 = vmatprep.subr.mxu0 0.0
    %103 = vmatpush1.msra.mxu0 0.0
    %104 = vmatprep.subr.mxu0 0.0
    %105 = vmatpush1.msra.mxu0 0.0
    %106 = vmatprep.subr.mxu0 0.0
    %107 = vmatpush1.msra.mxu0 0.0
    %108 = vmatprep.subr.mxu0 0.0
    %109 = vmatpush1.msra.mxu0 0.0
    %110 = vmatprep.subr.mxu0 0.0
    %111 = vmatpush1.msra.mxu0 0.0
    %112 = vmatprep.mubr.f32.mxu0 0.0
    %113 = vmatmul.mubr.f32.gmra.mrb[0].mxu0 %v43
    %v114 = vpop.f32.mrb[0].mxu0
    %v115 = vadd.f32 %v39, %v114
    %v116 = vpop.f32.mrb[0].mxu0
    %117 = vmatprep.mubr.f32.mxu0 0.0
    %118 = vmatmul.mubr.f32.gmra.mrb[0].mxu0 %v46
    %v119 = vpop.f32.mrb[0].mxu0
    %v120 = vadd.f32 %v39, %v119
    %v121 = vpop.f32.mrb[0].mxu0
    %122 = vdwg.mxu0
    %v123 = vmul.f32 %v115, 0.5
    %v124 = vmul.f32 %v120, 0.5
    %v125 = vmul.f32 %v115, 0.70710677
    %v126 = vmul.f32 %v120, 0.70710677
    %v127 = verf.f32.pop %v125
    %v128 = verf.f32.pop %v126
    %v129 = vadd.f32 %v127, 1.0
    %v130 = vadd.f32 %v128, 1.0
    %v131 = vmul.f32 %v123, %v129
    %v132 = vmul.f32 %v124, %v130
    %v133 = vld [vmem:[#allocation2] sm:$0xff]
    %v134 = vld [vmem:[#allocation2 + $0x8] sm:$0xff]
    %v135 = vld [vmem:[%s3] sm:$0xff]
    %v136 = vld [vmem:[%s3 + $0x8] sm:$0xff]
    %v137 = vld [vmem:[%s3 + $0x10] sm:$0xff]
    %v138 = vld [vmem:[%s3 + $0x18] sm:$0xff]
    %v139 = vld [vmem:[%s3 + $0x20] sm:$0xff]
    %v140 = vld [vmem:[%s3 + $0x28] sm:$0xff]
    %v141 = vld [vmem:[%s3 + $0x30] sm:$0xff]
    %v142 = vld [vmem:[%s3 + $0x38] sm:$0xff]
    %v143 = vld [vmem:[%s3 + $0x40] sm:$0xff]
    %v144 = vld [vmem:[%s3 + $0x48] sm:$0xff]
    %v145 = vld [vmem:[%s3 + $0x50] sm:$0xff]
    %v146 = vld [vmem:[%s3 + $0x58] sm:$0xff]
    %v147 = vld [vmem:[%s3 + $0x60] sm:$0xff]
    %v148 = vld [vmem:[%s3 + $0x68] sm:$0xff]
    %v149 = vld [vmem:[%s3 + $0x70] sm:$0xff]
    %v150 = vld [vmem:[%s3 + $0x78] sm:$0xff]
    %151 = vmatprep.subr.mxu0 0.0
    %152 = vmatpush1.msra.mxu0 %v135
    %153 = vmatprep.subr.mxu0 0.0
    %154 = vmatpush1.msra.mxu0 %v136
    %155 = vmatprep.subr.mxu0 0.0
    %156 = vmatpush1.msra.mxu0 %v137
    %157 = vmatprep.subr.mxu0 0.0
    %158 = vmatpush1.msra.mxu0 %v138
    %159 = vmatprep.subr.mxu0 0.0
    %160 = vmatpush1.msra.mxu0 %v139
    %161 = vmatprep.subr.mxu0 0.0
    %162 = vmatpush1.msra.mxu0 %v140
    %163 = vmatprep.subr.mxu0 0.0
    %164 = vmatpush1.msra.mxu0 %v141
    %165 = vmatprep.subr.mxu0 0.0
    %166 = vmatpush1.msra.mxu0 %v142
    %167 = vmatprep.subr.mxu0 0.0
    %168 = vmatpush1.msra.mxu0 %v143
    %169 = vmatprep.subr.mxu0 0.0
    %170 = vmatpush1.msra.mxu0 %v144
    %171 = vmatprep.subr.mxu0 0.0
    %172 = vmatpush1.msra.mxu0 %v145
    %173 = vmatprep.subr.mxu0 0.0
    %174 = vmatpush1.msra.mxu0 %v146
    %175 = vmatprep.subr.mxu0 0.0
    %176 = vmatpush1.msra.mxu0 %v147
    %177 = vmatprep.subr.mxu0 0.0
    %178 = vmatpush1.msra.mxu0 %v148
    %179 = vmatprep.subr.mxu0 0.0
    %180 = vmatpush1.msra.mxu0 %v149
    %181 = vmatprep.subr.mxu0 0.0
    %182 = vmatpush1.msra.mxu0 %v150
    %183 = vmatprep.subr.mxu0 0.0
    %184 = vmatpush1.msra.mxu0 0.0
    %185 = vmatprep.subr.mxu0 0.0
    %186 = vmatpush1.msra.mxu0 0.0
    %187 = vmatprep.subr.mxu0 0.0
    %188 = vmatpush1.msra.mxu0 0.0
    %189 = vmatprep.subr.mxu0 0.0
    %190 = vmatpush1.msra.mxu0 0.0
    %191 = vmatprep.subr.mxu0 0.0
    %192 = vmatpush1.msra.mxu0 0.0
    %193 = vmatprep.subr.mxu0 0.0
    %194 = vmatpush1.msra.mxu0 0.0
    %195 = vmatprep.subr.mxu0 0.0
    %196 = vmatpush1.msra.mxu0 0.0
    %197 = vmatprep.subr.mxu0 0.0
    %198 = vmatpush1.msra.mxu0 0.0
    %199 = vmatprep.subr.mxu0 0.0
    %200 = vmatpush1.msra.mxu0 0.0
    %201 = vmatprep.subr.mxu0 0.0
    %202 = vmatpush1.msra.mxu0 0.0
    %203 = vmatprep.subr.mxu0 0.0
    %204 = vmatpush1.msra.mxu0 0.0
    %205 = vmatprep.subr.mxu0 0.0
    %206 = vmatpush1.msra.mxu0 0.0
    %207 = vmatprep.subr.mxu0 0.0
    %208 = vmatpush1.msra.mxu0 0.0
    %209 = vmatprep.subr.mxu0 0.0
    %210 = vmatpush1.msra.mxu0 0.0
    %211 = vmatprep.subr.mxu0 0.0
    %212 = vmatpush1.msra.mxu0 0.0
    %213 = vmatprep.subr.mxu0 0.0
    %214 = vmatpush1.msra.mxu0 0.0
    %215 = vmatprep.mubr.f32.mxu0 0.0
    %216 = vmatmul.mubr.f32.gmra.mrb[0].mxu0 %v131
    %v217 = vpop.f32.mrb[0].mxu0
    %v218 = vadd.f32 0.0, %v217
    %v219 = vpop.f32.mrb[0].mxu0
    %220 = vmatprep.mubr.f32.mxu0 0.0
    %221 = vmatmul.mubr.f32.gmra.mrb[0].mxu0 %v132
    %v222 = vpop.f32.mrb[0].mxu0
    %v223 = vadd.f32 0.0, %v222
    %v224 = vpop.f32.mrb[0].mxu0
    %225 = vdwg.mxu0
    %v226 = vadd.f32 %v133, %v218
    %v227 = vadd.f32 %v134, %v223
    %228 = vst.msk [vmem:[#allocation2] sm:$0xff] %vm41, %v226
    %229 = vst.msk [vmem:[#allocation2 + $0x8] sm:$0xff] %vm41, %v227
    // Predicated region
    $region26: #{tpu_custom_call.1} parent=1 // pred_check
      %p230 = pneg %p21
    $region27: #{tpu_custom_call.1} parent=1 // pred_check_branch
      %232 = sbr.rel (%p230) target = $region29
    $region28: #{tpu_custom_call.1} parent=1 // pred_region
      %v233 = vld [vmem:[#allocation2] sm:$0xff]
      %v234 = vld [vmem:[#allocation2 + $0x8] sm:$0xff]
      %v235 = vld [vmem:[%s4] sm:$0x1]
      %v237 = vlaneseq
      %v238 = vshrl.u32 %v237, 7
      %v239 = vsub.s32 0, %v238
      %v240 = vrot.slane %v235, %v239
      %v242 = vadd.f32 %v233, %v240
      %v243 = vadd.f32 %v234, %v240
      %v244 = vmul.f32 %v242, 0.5
      %v245 = vmul.f32 %v243, 0.5
      %v246 = vmul.f32 %v242, 0.70710677
      %v247 = vmul.f32 %v243, 0.70710677
      %v248 = verf.f32.pop %v246
      %v249 = verf.f32.pop %v247
      %v250 = vadd.f32 %v248, 1.0
      %v251 = vadd.f32 %v249, 1.0
      %v252 = vmul.f32 %v244, %v250
      %v253 = vmul.f32 %v245, %v251
      %254 = vst.msk [vmem:[#allocation3] sm:$0xff] %vm41, %v252
      %255 = vst.msk [vmem:[#allocation3 + $0x8] sm:$0xff] %vm41, %v253
    $region29: #{tpu_custom_call.1} parent=1 // pred_fallthru
      _
    // Predicated region
    $region30: #{tpu_custom_call.1} parent=1 // pred_check
      _
    $region31: #{tpu_custom_call.1} parent=1 // pred_check_branch
      %257 = sbr.rel (0) target = $region33
    $region32: #{tpu_custom_call.1} parent=1 // pred_region
      %s259 = ssub.s32 256, 256
      %260 = vsyncadd [#allocation4], %s259
      %s261 = sshll.u32 [#allocation3], 4
      %s262 = int_to_ptr.vmem [resolvable:$true] %s261
      %267 = dma.vmem_to_hbm [thread:$0]  %s262, 256, %s5, [#allocation4], 128, 128, 8
    $region33: #{tpu_custom_call.1} parent=1 // pred_fallthru
      _
    // Predicated region
    $region34: #{tpu_custom_call.1} parent=1 // pred_check
      _
    $region35: #{tpu_custom_call.1} parent=1 // pred_check_branch
      %269 = sbr.rel (0) target = $region37
    $region36: #{tpu_custom_call.1} parent=1 // pred_region
      %270 = dma.done [#allocation4], 256
    $region37: #{tpu_custom_call.1} parent=1 // pred_fallthru
      _
    %271 = vsyncpa [#allocation4], 1

</llo_original>
